<compile_context>
chip_gen: v7x
topology: tpu7x:2x2x1
jax: 0.10.0
libtpu: 0.0.40
codegen_flags: <defaults>
</compile_context>

<pallas_src>
import functools

import jax
import jax.numpy as jnp
from jax.experimental import pallas as pl
from jax.experimental.pallas import tpu as pltpu


def _make_kernel(n, matmul_dtype):
    """n = number of real (unpadded) rows of z; all shapes are static."""

    def kernel(zi_ref, zj_ref, out_ref):
        i = pl.program_id(0)
        j = pl.program_id(1)
        tm, tn = out_ref.shape
        row0 = i * tm
        col0 = j * tn

        # Tiles entirely inside the zero-padding region: skip compute.
        @pl.when((row0 >= n) | (col0 >= n))
        def _pad_tile():
            out_ref[...] = jnp.zeros_like(out_ref)

        # Tiles that touch the real (n, n) block: compute + fused mask.
        @pl.when((row0 < n) & (col0 < n))
        def _compute_tile():
            zi = zi_ref[...].astype(jnp.float32)
            zj = zj_ref[...].astype(jnp.float32)

            # F.normalize(z, p=2, dim=1): 1/max(||row||_2, 1e-12) via rsqrt
            # (rsqrt(max(s, 1e-24)) == 1/max(sqrt(s), 1e-12)).
            inv_i = jax.lax.rsqrt(
                jnp.maximum(jnp.sum(zi * zi, axis=1, keepdims=True), 1e-24))
            inv_j = jax.lax.rsqrt(
                jnp.maximum(jnp.sum(zj * zj, axis=1, keepdims=True), 1e-24))
            zi_n = (zi * inv_i).astype(matmul_dtype)
            zj_n = (zj * inv_j).astype(matmul_dtype)

            # cos_sim = zi_n @ zj_n.T without materializing a transpose.
            cos = jax.lax.dot_general(
                zi_n, zj_n,
                dimension_numbers=(((1,), (1,)), ((), ())),
                preferred_element_type=jnp.float32)
            adj = jax.nn.sigmoid(cos)

            # Fused padding + diagonal mask; single lane-dense full-tile store.
            # (Padding rows give cos == 0, sigmoid(0) == 0.5, so the mask is
            # mandatory, not cosmetic.)
            row = row0 + jax.lax.broadcasted_iota(jnp.int32, (tm, 1), 0)
            col = col0 + jax.lax.broadcasted_iota(jnp.int32, (1, tn), 1)
            valid = (row < n) & (col < n) & (row != col)
            out_ref[...] = jnp.where(valid, adj, 0.0).astype(out_ref.dtype)

    return kernel


def _pick_tile(max_nodes):
    # Largest lane-dense tile (multiple of 128) that divides max_nodes,
    # capped at 512 so output tile + cos/adj temps stay a few MiB
    # (fits v7x's 64 MiB VMEM as well as v5e/v6e's 128 MiB).
    for t in (512, 256, 128):
        if max_nodes % t == 0:
            return t
    return max_nodes  # small / irregular max_nodes: single full-array block


@functools.partial(jax.jit,
                   static_argnums=(1,),
                   static_argnames=("tile", "use_bf16_matmul"))
def bilinear_edge_decoder(z, max_nodes, *, tile=None, use_bf16_matmul=False):
    """z: (N, D) array. Returns (max_nodes, max_nodes) f32 padded adjacency."""
    n, d = z.shape
    if n > max_nodes:
        raise ValueError("num_nodes must be <= max_nodes")
    if tile is None:
        tile = _pick_tile(max_nodes)
    if max_nodes % tile != 0:
        raise ValueError("tile must divide max_nodes")
    grid = (max_nodes // tile, max_nodes // tile)

    # Pad z with zero rows so every grid point fetches a full (tile, D) row
    # block; padded rows are masked to zero inside the kernel.
    z_pad = jnp.zeros((max_nodes, d), jnp.float32).at[:n, :].set(
        z.astype(jnp.float32))

    # bf16 MXU inputs are numerically safe for cosine->sigmoid, but default to
    # f32 to match the PyTorch module's numerics exactly.
    matmul_dtype = jnp.bfloat16 if use_bf16_matmul else jnp.float32
    kernel = _make_kernel(n, matmul_dtype)

    return pl.pallas_call(
        kernel,
        out_shape=jax.ShapeDtypeStruct((max_nodes, max_nodes), jnp.float32),
        grid_spec=pltpu.PrefetchScalarGridSpec(
            num_scalar_prefetch=0,
            grid=grid,
            in_specs=[
                pl.BlockSpec((tile, d), lambda i, j: (i, 0)),  # row block i
                pl.BlockSpec((tile, d), lambda i, j: (j, 0)),  # row block j
            ],
            out_specs=pl.BlockSpec((tile, tile), lambda i, j: (i, j)),
        ),
        compiler_params=pltpu.CompilerParams(
            dimension_semantics=("parallel", "parallel"),
            vmem_limit_bytes=32 * 1024 * 1024,
        ),
    )(z_pad, z_pad)


def _reference(z, max_nodes):
    """Pure-JAX reference mirroring the PyTorch forward."""
    n = z.shape[0]
    norm = jnp.sqrt(jnp.sum(z * z, axis=1, keepdims=True))
    z_norm = z / jnp.maximum(norm, 1e-12)
    cos_sim = z_norm @ z_norm.T
    adj = jax.nn.sigmoid(cos_sim)
    adj = adj * (1.0 - jnp.eye(n, dtype=z.dtype))
    padded = jnp.zeros((max_nodes, max_nodes), dtype=jnp.float32)
    return padded.at[:n, :n].set(adj)


if __name__ == "__main__":
    key = jax.random.PRNGKey(0)
    feature_dim = 32

    # Case 1: small shapes consistent with the module (single-tile grid).
    num_nodes, max_nodes = 8, 16
    z = jax.random.normal(key, (num_nodes, feature_dim), dtype=jnp.float32)
    out = jax.block_until_ready(bilinear_edge_decoder(z, max_nodes))
    ref = _reference(z, max_nodes)
    assert out.shape == (max_nodes, max_nodes)
    assert jnp.allclose(out, ref, atol=1e-5, rtol=1e-5), "case1 mismatch"

    # Case 2: 2x2 tiled grid with ragged N -> exercises the fused
    # padding+diagonal mask and the pure-padding-tile pl.when fast path.
    num_nodes2, max_nodes2 = 40, 256
    z2 = jax.random.normal(jax.random.PRNGKey(0),
                           (num_nodes2, feature_dim), dtype=jnp.float32)
    out2 = jax.block_until_ready(
        bilinear_edge_decoder(z2, max_nodes2, tile=128))
    ref2 = _reference(z2, max_nodes2)
    assert out2.shape == (max_nodes2, max_nodes2)
    assert jnp.allclose(out2, ref2, atol=1e-5, rtol=1e-5), "case2 mismatch"

    print("KERNEL_OK")
</pallas_src>

<mosaic_0001>
module attributes {stable_mosaic.version = 11 : i64} {
  func.func @kernel(%arg0: i32, %arg1: i32, %arg2: memref<16x32xf32, #tpu.memory_space<vmem>>, %arg3: memref<16x32xf32, #tpu.memory_space<vmem>>, %arg4: memref<16x16xf32, #tpu.memory_space<vmem>>) attributes {dimension_semantics = [#tpu.dimension_semantics<parallel>, #tpu.dimension_semantics<parallel>], iteration_bounds = array<i64: 1, 1>, scalar_prefetch = 0 : i64, scratch_operands = 0 : i64, tpu.core_type = #tpu.core_type<tc>, window_params = [{transform_indices = @transform_0, window_bounds = array<i64: 16, 32>}, {transform_indices = @transform_1, window_bounds = array<i64: 16, 32>}, {transform_indices = @transform_2, window_bounds = array<i64: 16, 16>}]} {
    %c16_i32 = arith.constant 16 : i32
    %0 = arith.muli %arg0, %c16_i32 : i32
    %c16_i32_0 = arith.constant 16 : i32
    %1 = arith.muli %arg1, %c16_i32_0 : i32
    %c8_i32 = arith.constant 8 : i32
    %2 = arith.cmpi sge, %0, %c8_i32 : i32
    %c8_i32_1 = arith.constant 8 : i32
    %3 = arith.cmpi sge, %1, %c8_i32_1 : i32
    %4 = arith.ori %2, %3 : i1
    %5 = arith.extui %4 : i1 to i32
    %c0_i32 = arith.constant 0 : i32
    %6 = arith.cmpi ne, %5, %c0_i32 : i32
    scf.if %6 {
      %cst = arith.constant 0.000000e+00 : f32
      %12 = vector.broadcast %cst : f32 to vector<16x16xf32>
      %c0 = arith.constant 0 : index
      %c0_5 = arith.constant 0 : index
      %13 = vector.load %arg4[%c0, %c0_5] : memref<16x16xf32, #tpu.memory_space<vmem>>, vector<16x16xf32>
      tpu.vector_store %arg4[%c0, %c0_5], %12 {strides = array<i32>} : memref<16x16xf32, #tpu.memory_space<vmem>>, vector<16x16xf32>,
    } else {
    }
    %c8_i32_2 = arith.constant 8 : i32
    %7 = arith.cmpi slt, %0, %c8_i32_2 : i32
    %c8_i32_3 = arith.constant 8 : i32
    %8 = arith.cmpi slt, %1, %c8_i32_3 : i32
    %9 = arith.andi %7, %8 : i1
    %10 = arith.extui %9 : i1 to i32
    %c0_i32_4 = arith.constant 0 : i32
    %11 = arith.cmpi ne, %10, %c0_i32_4 : i32
    scf.if %11 {
      %c0 = arith.constant 0 : index
      %c0_5 = arith.constant 0 : index
      %12 = vector.load %arg2[%c0, %c0_5] : memref<16x32xf32, #tpu.memory_space<vmem>>, vector<16x32xf32>
      %c0_6 = arith.constant 0 : index
      %c0_7 = arith.constant 0 : index
      %13 = vector.load %arg3[%c0_6, %c0_7] : memref<16x32xf32, #tpu.memory_space<vmem>>, vector<16x32xf32>
      %14 = arith.mulf %12, %12 : vector<16x32xf32>
      %cst = arith.constant dense<0.000000e+00> : vector<16xf32>
      %15 = vector.multi_reduction <add>, %14, %cst [1] : vector<16x32xf32> to vector<16xf32>
      %16 = vector.shape_cast %15 : vector<16xf32> to vector<16x1xf32>
      %cst_8 = arith.constant 1.000000e-24 : f32
      %17 = vector.broadcast %cst_8 : f32 to vector<16x1xf32>
      %18 = arith.maximumf %16, %17 : vector<16x1xf32>
      %19 = math.rsqrt %18 : vector<16x1xf32>
      %20 = arith.mulf %13, %13 : vector<16x32xf32>
      %cst_9 = arith.constant dense<0.000000e+00> : vector<16xf32>
      %21 = vector.multi_reduction <add>, %20, %cst_9 [1] : vector<16x32xf32> to vector<16xf32>
      %22 = vector.shape_cast %21 : vector<16xf32> to vector<16x1xf32>
      %cst_10 = arith.constant 1.000000e-24 : f32
      %23 = vector.broadcast %cst_10 : f32 to vector<16x1xf32>
      %24 = arith.maximumf %22, %23 : vector<16x1xf32>
      %25 = math.rsqrt %24 : vector<16x1xf32>
      %26 = vector.broadcast %19 : vector<16x1xf32> to vector<16x32xf32>
      %27 = arith.mulf %12, %26 : vector<16x32xf32>
      %28 = vector.broadcast %25 : vector<16x1xf32> to vector<16x32xf32>
      %29 = arith.mulf %13, %28 : vector<16x32xf32>
      %cst_11 = arith.constant dense<0.000000e+00> : vector<16x16xf32>
      %30 = tpu.matmul %27, %29, %cst_11 {dimension_numbers = #tpu.dot_dimension_numbers<[1], [1], [0], [0], [0, 0, 1, 0], [], []>} : vector<16x32xf32>, vector<16x32xf32>, vector<16x16xf32> -> vector<16x16xf32>
      %31 = arith.negf %30 : vector<16x16xf32>
      %32 = math.exp %31 : vector<16x16xf32>
      %cst_12 = arith.constant 1.000000e+00 : f32
      %33 = vector.broadcast %cst_12 : f32 to vector<16x16xf32>
      %34 = arith.addf %33, %32 : vector<16x16xf32>
      %35 = arith.divf %33, %34 : vector<16x16xf32>
      %36 = tpu.iota {dimensions = array<i32: 0>} : vector<16x1xi32>
      %37 = vector.broadcast %0 : i32 to vector<16x1xi32>
      %38 = arith.addi %37, %36 : vector<16x1xi32>
      %39 = tpu.iota {dimensions = array<i32: 1>} : vector<1x16xi32>
      %40 = vector.broadcast %1 : i32 to vector<1x16xi32>
      %41 = arith.addi %40, %39 : vector<1x16xi32>
      %c8_i32_13 = arith.constant 8 : i32
      %42 = vector.broadcast %c8_i32_13 : i32 to vector<16x1xi32>
      %43 = arith.cmpi slt, %38, %42 : vector<16x1xi32>
      %c8_i32_14 = arith.constant 8 : i32
      %44 = vector.broadcast %c8_i32_14 : i32 to vector<1x16xi32>
      %45 = arith.cmpi slt, %41, %44 : vector<1x16xi32>
      %46 = vector.broadcast %43 : vector<16x1xi1> to vector<16x16xi1>
      %47 = vector.broadcast %45 : vector<1x16xi1> to vector<16x16xi1>
      %48 = arith.andi %46, %47 : vector<16x16xi1>
      %49 = vector.broadcast %38 : vector<16x1xi32> to vector<16x16xi32>
      %50 = vector.broadcast %41 : vector<1x16xi32> to vector<16x16xi32>
      %51 = arith.cmpi ne, %49, %50 : vector<16x16xi32>
      %52 = arith.andi %48, %51 : vector<16x16xi1>
      %cst_15 = arith.constant 0.000000e+00 : f32
      %53 = vector.broadcast %cst_15 : f32 to vector<16x16xf32>
      %54 = arith.select %52, %35, %53 : vector<16x16xi1>, vector<16x16xf32>
      %c0_16 = arith.constant 0 : index
      %c0_17 = arith.constant 0 : index
      %55 = vector.load %arg4[%c0_16, %c0_17] : memref<16x16xf32, #tpu.memory_space<vmem>>, vector<16x16xf32>
      tpu.vector_store %arg4[%c0_16, %c0_17], %54 {strides = array<i32>} : memref<16x16xf32, #tpu.memory_space<vmem>>, vector<16x16xf32>,
    } else {
    }
    return
  }
  func.func @transform_0(%arg0: i32, %arg1: i32) -> (i32, i32) {
    %c0_i32 = arith.constant 0 : i32
    %c0_i32_0 = arith.constant 0 : i32
    return %arg0, %c0_i32 : i32, i32
  }
  func.func @transform_1(%arg0: i32, %arg1: i32) -> (i32, i32) {
    %c0_i32 = arith.constant 0 : i32
    %c0_i32_0 = arith.constant 0 : i32
    return %arg1, %c0_i32 : i32, i32
  }
  func.func @transform_2(%arg0: i32, %arg1: i32) -> (i32, i32) {
    %c0_i32 = arith.constant 0 : i32
    return %arg0, %arg1 : i32, i32
  }
}

</mosaic_0001>

<llo_original>
// kernel: bilinear_edge_decoder.1
$region0: #{bilinear_edge_decoder.1}
  #allocation0 [shape = 'u32[]', space=smem, size = 0x4, offset = 0x4, fixed_abs, tag = 'smem constant byte address 0x4 - core index']
  #allocation1 [shape = 'u32[144,128]{1,0:T(1,128)}', space=vmem, size = 0x12000, scoped, tag = 'internal scratch']
  %s0 = inlined_call_operand.vmem [shape: f32[16,32], index: 0, kind: input, shape index: {}, may-alias: {0,1}]
  %s1 = inlined_call_operand.vmem [shape: f32[16,32], index: 1, kind: input, shape index: {}, may-alias: {0,1}]
  %s2 = inlined_call_operand.hbm [shape: f32[16,16], index: 2, kind: output, shape index: {}]
  %s3 = sld [smem:[#allocation0]]
  $region26: #{bilinear_edge_decoder.1} parent=0
    _
  %s5 = ssub.s32 1, %s3
  %s6 = scalar_select 0, %s5, %s3
  $region1: #{bilinear_edge_decoder.1} parent=0
    #allocation2 [shape = 'u8[8192]{0}', space=vmem, size = 0x2000, scoped, tag = 'output window, operand 0, single buffered']
    #allocation3 [shape = 's32[1]{0}', space=sflag, size = 0x4, scoped, tag = 'scoped memory for bilinear_edge_decoder.1']
    %7 = vsyncpa [#allocation3], 0
    // Predicated region
    $region2: #{bilinear_edge_decoder.1} parent=1 // pred_check
      _
    $region3: #{bilinear_edge_decoder.1} parent=1 // pred_check_branch
      %9 = sbr.rel (0) target = $region5
    $region4: #{bilinear_edge_decoder.1} parent=1 // pred_region
      _
    $region5: #{bilinear_edge_decoder.1} parent=1 // pred_fallthru
      _
    // Predicated region
    $region6: #{bilinear_edge_decoder.1} parent=1 // pred_check
      _
    $region7: #{bilinear_edge_decoder.1} parent=1 // pred_check_branch
      %11 = sbr.rel (0) target = $region9
    $region8: #{bilinear_edge_decoder.1} parent=1 // pred_region
      _
    $region9: #{bilinear_edge_decoder.1} parent=1 // pred_fallthru
      _
    %s12 = smul.u32 0, 16
    %s13 = smul.u32 0, 16
    %p14 = scmp.ge.s32.totalorder %s12, 8
    %p15 = scmp.ge.s32.totalorder %s13, 8
    %p16 = por %p14, %p15
    // Predicated region
    $region10: #{bilinear_edge_decoder.1} parent=1 // pred_check
      %p17 = pneg %p16
    $region11: #{bilinear_edge_decoder.1} parent=1 // pred_check_branch
      %19 = sbr.rel (%p17) target = $region13
    $region12: #{bilinear_edge_decoder.1} parent=1 // pred_region
      %vm20 = vcmask 130048
      %21 = vst.msk [vmem:[#allocation2] sm:$0xff] %vm20, 0.0
      %22 = vst.msk [vmem:[#allocation2 + $0x8] sm:$0xff] %vm20, 0.0
    $region13: #{bilinear_edge_decoder.1} parent=1 // pred_fallthru
      _
    %p23 = scmp.lt.s32.totalorder %s12, 8
    %p24 = scmp.lt.s32.totalorder %s13, 8
    %p25 = pnand %p23, %p24
    %p26 = pneg %p25
    // Predicated region
    $region14: #{bilinear_edge_decoder.1} parent=1 // pred_check
      _
    $region15: #{bilinear_edge_decoder.1} parent=1 // pred_check_branch
      %28 = sbr.rel (%p25) target = $region17
    $region16: #{bilinear_edge_decoder.1} parent=1 // pred_region
      %v29 = vld [vmem:[%s0] sm:$0xff]
      %v30 = vld [vmem:[%s0 + $0x8] sm:$0xff]
      %v31 = vld [vmem:[%s1] sm:$0xff]
      %v32 = vld [vmem:[%s1 + $0x8] sm:$0xff]
      %v33 = vmul.f32 %v29, %v29
      %v34 = vmul.f32 %v30, %v30
      %vm35 = vcmask 261120
      %v36 = vsel %vm35, %v33, 0.0
      %37 = vadd.xlane.f32.xlu0 %v36
      %v38 = vpop.xlane.xlu0 %37
      %v39 = vsel %vm35, %v34, 0.0
      %40 = vadd.xlane.f32.xlu0 %v39
      %v41 = vpop.xlane.xlu0 %40
      %v42 = vmax.f32 %v38, 1e-24
      %v43 = vmax.f32 %v41, 1e-24
      %v44 = vrsqrt.pop %v42
      %v45 = vrsqrt.pop %v43
      %v46 = vmul.f32 %v31, %v31
      %v47 = vmul.f32 %v32, %v32
      %v48 = vsel %vm35, %v46, 0.0
      %49 = vadd.xlane.f32.xlu0 %v48
      %v50 = vpop.xlane.xlu0 %49
      %v51 = vsel %vm35, %v47, 0.0
      %52 = vadd.xlane.f32.xlu0 %v51
      %v53 = vpop.xlane.xlu0 %52
      %v54 = vmax.f32 %v50, 1e-24
      %v55 = vmax.f32 %v53, 1e-24
      %v56 = vrsqrt.pop %v54
      %v57 = vrsqrt.pop %v55
      %v58 = vmul.f32 %v29, %v44
      %v59 = vmul.f32 %v30, %v45
      %v60 = vmul.f32 %v31, %v56
      %v61 = vmul.f32 %v32, %v57
      %v63 = vsel %vm35, %v58, 0
      %v66 = vsel %vm35, %v59, 0
      %v69 = vsel %vm35, %v60, 0
      %v72 = vsel %vm35, %v61, 0
      %74 = vmatprep.subr.mxu0 0.0
      %75 = vmatpush1.xpose.msra.mxu0 %v69
      %76 = vmatprep.subr.mxu0 0.0
      %77 = vmatpush1.xpose.msra.mxu0 %v72
      %78 = vmatprep.subr.mxu0 0.0
      %79 = vmatpush1.xpose.msra.mxu0 0.0
      %80 = vmatprep.subr.mxu0 0.0
      %81 = vmatpush1.xpose.msra.mxu0 0.0
      %82 = vmatprep.subr.mxu0 0.0
      %83 = vmatpush1.xpose.msra.mxu0 0.0
      %84 = vmatprep.subr.mxu0 0.0
      %85 = vmatpush1.xpose.msra.mxu0 0.0
      %86 = vmatprep.subr.mxu0 0.0
      %87 = vmatpush1.xpose.msra.mxu0 0.0
      %88 = vmatprep.subr.mxu0 0.0
      %89 = vmatpush1.xpose.msra.mxu0 0.0
      %90 = vmatprep.subr.mxu0 0.0
      %91 = vmatpush1.xpose.msra.mxu0 0.0
      %92 = vmatprep.subr.mxu0 0.0
      %93 = vmatpush1.xpose.msra.mxu0 0.0
      %94 = vmatprep.subr.mxu0 0.0
      %95 = vmatpush1.xpose.msra.mxu0 0.0
      %96 = vmatprep.subr.mxu0 0.0
      %97 = vmatpush1.xpose.msra.mxu0 0.0
      %98 = vmatprep.subr.mxu0 0.0
      %99 = vmatpush1.xpose.msra.mxu0 0.0
      %100 = vmatprep.subr.mxu0 0.0
      %101 = vmatpush1.xpose.msra.mxu0 0.0
      %102 = vmatprep.subr.mxu0 0.0
      %103 = vmatpush1.xpose.msra.mxu0 0.0
      %104 = vmatprep.subr.mxu0 0.0
      %105 = vmatpush1.xpose.msra.mxu0 0.0
      %106 = vmatprep.subr.mxu0 0.0
      %107 = vmatpush1.xpose.msra.mxu0 0.0
      %108 = vmatprep.subr.mxu0 0.0
      %109 = vmatpush1.xpose.msra.mxu0 0.0
      %110 = vmatprep.subr.mxu0 0.0
      %111 = vmatpush1.xpose.msra.mxu0 0.0
      %112 = vmatprep.subr.mxu0 0.0
      %113 = vmatpush1.xpose.msra.mxu0 0.0
      %114 = vmatprep.subr.mxu0 0.0
      %115 = vmatpush1.xpose.msra.mxu0 0.0
      %116 = vmatprep.subr.mxu0 0.0
      %117 = vmatpush1.xpose.msra.mxu0 0.0
      %118 = vmatprep.subr.mxu0 0.0
      %119 = vmatpush1.xpose.msra.mxu0 0.0
      %120 = vmatprep.subr.mxu0 0.0
      %121 = vmatpush1.xpose.msra.mxu0 0.0
      %122 = vmatprep.subr.mxu0 0.0
      %123 = vmatpush1.xpose.msra.mxu0 0.0
      %124 = vmatprep.subr.mxu0 0.0
      %125 = vmatpush1.xpose.msra.mxu0 0.0
      %126 = vmatprep.subr.mxu0 0.0
      %127 = vmatpush1.xpose.msra.mxu0 0.0
      %128 = vmatprep.subr.mxu0 0.0
      %129 = vmatpush1.xpose.msra.mxu0 0.0
      %130 = vmatprep.subr.mxu0 0.0
      %131 = vmatpush1.xpose.msra.mxu0 0.0
      %132 = vmatprep.subr.mxu0 0.0
      %133 = vmatpush1.xpose.msra.mxu0 0.0
      %134 = vmatprep.subr.mxu0 0.0
      %135 = vmatpush1.xpose.msra.mxu0 0.0
      %136 = vmatprep.subr.mxu0 0.0
      %137 = vmatpush1.xpose.msra.mxu0 0.0
      %138 = vmatprep.mubr.f32.mxu0 0.0
      %139 = vmatmul.mubr.f32.gmra.mrb[0].mxu0 %v63
      %v140 = vpop.f32.mrb[0].mxu0
      %v141 = vadd.f32 0.0, %v140
      %v142 = vpop.f32.mrb[0].mxu0
      %143 = vmatprep.mubr.f32.mxu0 0.0
      %144 = vmatmul.mubr.f32.gmra.mrb[0].mxu0 %v66
      %v145 = vpop.f32.mrb[0].mxu0
      %v146 = vadd.f32 0.0, %v145
      %v147 = vpop.f32.mrb[0].mxu0
      %148 = vdwg.mxu0
      %v149 = vxor.u32 %v141, 2147483648
      %v150 = vxor.u32 %v146, 2147483648
      %v151 = vmul.f32 %v149, 1.442695
      %v152 = vpow.pop %v151
      %v153 = vmul.f32 %v150, 1.442695
      %v154 = vpow.pop %v153
      %v155 = vadd.f32 %v152, 1.0
      %v156 = vadd.f32 %v154, 1.0
      %v157 = vrcp.pop %v155
      %v158 = vmul.f32 1.0, %v157
      %v159 = vrcp.pop %v156
      %v160 = vmul.f32 1.0, %v159
      %v161 = vlaneseq
      %v162 = vshrl.u32 %v161, 7
      %v163 = vadd.s32 %v162, 8
      %v164 = vstv %s12
      %v165 = vadd.s32 %v164, %v162
      %v166 = vadd.s32 %v164, %v163
      %v167 = vlaneseq
      %v168 = vand.u32 %v167, 127
      %v169 = vstv %s13
      %v170 = vadd.s32 %v169, %v168
      %vm171 = vcmp.lt.s32.totalorder %v165, 8
      %vm172 = vcmp.lt.s32.totalorder %v166, 8
      %vm173 = vcmp.lt.s32.totalorder %v170, 8
      %v174 = vsel %vm171, 1, 0
      %v175 = vsel %vm172, 1, 0
      %vm176 = vcmp.eq.s32.totalorder %v174, 1
      %vm177 = vcmp.eq.s32.totalorder %v175, 1
      %v178 = vsel %vm173, 1, 0
      %vm179 = vcmp.eq.s32.totalorder %v178, 1
      %vm180 = vmand %vm176, %vm179
      %vm181 = vmand %vm177, %vm179
      %vm182 = vcmp.ne.s32.totalorder %v165, %v170
      %vm183 = vcmp.ne.s32.totalorder %v166, %v170
      %vm184 = vmand %vm180, %vm182
      %vm185 = vmand %vm181, %vm183
      %v186 = vsel %vm184, %v158, 0.0
      %v187 = vsel %vm185, %v160, 0.0
      %vm188 = vcmask 130048
      %189 = vst.msk [vmem:[#allocation2] sm:$0xff] %vm188, %v186
      %190 = vst.msk [vmem:[#allocation2 + $0x8] sm:$0xff] %vm188, %v187
    $region17: #{bilinear_edge_decoder.1} parent=1 // pred_fallthru
      _
    // Predicated region
    $region18: #{bilinear_edge_decoder.1} parent=1 // pred_check
      _
    $region19: #{bilinear_edge_decoder.1} parent=1 // pred_check_branch
      %192 = sbr.rel (0) target = $region21
    $region20: #{bilinear_edge_decoder.1} parent=1 // pred_region
      %s194 = ssub.s32 256, 256
      %195 = vsyncadd [#allocation3], %s194
      %s196 = sshll.u32 [#allocation2], 4
      %s197 = int_to_ptr.vmem [resolvable:$true] %s196
      %202 = dma.vmem_to_hbm [thread:$0]  %s197, 256, %s2, [#allocation3], 128, 128, 8
    $region21: #{bilinear_edge_decoder.1} parent=1 // pred_fallthru
      _
    // Predicated region
    $region22: #{bilinear_edge_decoder.1} parent=1 // pred_check
      _
    $region23: #{bilinear_edge_decoder.1} parent=1 // pred_check_branch
      %204 = sbr.rel (0) target = $region25
    $region24: #{bilinear_edge_decoder.1} parent=1 // pred_region
      %205 = dma.done [#allocation3], 256
    $region25: #{bilinear_edge_decoder.1} parent=1 // pred_fallthru
      _
    %206 = vsyncpa [#allocation3], 1

</llo_original>
